<compile_context>
chip_gen: v7x
topology: tpu7x:2x2x1
jax: 0.10.0
libtpu: 0.0.40
codegen_flags: <defaults>
</compile_context>

<pallas_src>
import functools

import jax
import jax.numpy as jnp
from jax.experimental import pallas as pl
from jax.experimental.pallas import tpu as pltpu

LANE = 128      # TPU lane width
SUBLANE = 8     # f32 sublane tile


def _round_up(x, m):
    return (x + m - 1) // m * m


def _num_tensorcores():
    """Best-effort count of TensorCores per device (v7x megacore => 2)."""
    try:
        nc = getattr(jax.devices()[0], "num_cores", 1) or 1
        return max(1, min(int(nc), 2))
    except Exception:  # defensive: never let a perf heuristic break tracing
        return 1


# ---------------------------------------------------------------------------
# Pallas kernel: one batch tile of the full VAE forward
# ---------------------------------------------------------------------------
def _vae_kernel(
    state_ref, action_ref, eps_ref,                  # logical-width inputs
    w1s_ref, w1a_ref, b1_ref,                        # encoder L1 (split concat)
    w2_ref, b2_ref,                                  # encoder L2
    wm_ref, bm_ref, wl_ref, bl_ref,                  # mean / log_std heads
    dw1s_ref, dw1z_ref, db1_ref,                     # decoder L1 (split concat)
    dw2_ref, db2_ref,                                # decoder L2
    aw_ref, ab_ref,                                  # action head (tanh)
    out_ref,                                         # (TB, OW) packed output
    *, action_dim, z_dim, compute_dtype,
):
    f32 = jnp.float32
    cd = compute_dtype

    state = state_ref[...].astype(cd)
    action = action_ref[...].astype(cd)
    eps = eps_ref[...].astype(f32)

    # ----- encoder: cat(state, action) @ W1 == state @ W1_s + action @ W1_a
    h = (jnp.dot(state, w1s_ref[...], preferred_element_type=f32)
         + jnp.dot(action, w1a_ref[...], preferred_element_type=f32)
         + b1_ref[...])
    h = jnp.maximum(h, 0.0).astype(cd)
    h = jnp.dot(h, w2_ref[...], preferred_element_type=f32) + b2_ref[...]
    h = jnp.maximum(h, 0.0).astype(cd)

    # ----- heads (logical width z_dim; f32 math on the EUP) -----
    mean = jnp.dot(h, wm_ref[...], preferred_element_type=f32) + bm_ref[...]
    log_std = jnp.dot(h, wl_ref[...], preferred_element_type=f32) + bl_ref[...]
    std = jnp.exp(log_std)             # no clamp: matches the reference module
    z = (mean + std * eps).astype(cd)  # reparameterization, noise from host

    # ----- decoder: cat(state, z) @ DW1 == state @ DW1_s + z @ DW1_z
    d = (jnp.dot(state, dw1s_ref[...], preferred_element_type=f32)
         + jnp.dot(z, dw1z_ref[...], preferred_element_type=f32)
         + db1_ref[...])
    d = jnp.maximum(d, 0.0).astype(cd)
    d = jnp.dot(d, dw2_ref[...], preferred_element_type=f32) + db2_ref[...]
    d = jnp.maximum(d, 0.0).astype(cd)
    dec = jnp.tanh(jnp.dot(d, aw_ref[...], preferred_element_type=f32)
                   + ab_ref[...])

    # ----- pack [decoded | mean | std | 0] into one 128-lane output group.
    # The sub-width stores only touch the VMEM output tile (cheap masked vst);
    # the HBM writeback DMA of the tile stays lane-dense / unmasked.
    out_ref[...] = jnp.zeros_like(out_ref)
    out_ref[:, 0:action_dim] = dec
    out_ref[:, action_dim:action_dim + z_dim] = mean
    out_ref[:, action_dim + z_dim:action_dim + 2 * z_dim] = std


# ---------------------------------------------------------------------------
# Host-side packing of the logical weights (hidden dims padded to 128 lanes;
# input/head dims stay logical — the weights are VMEM-resident so their size
# is irrelevant and zero padding is exact for the linear algebra).
# ---------------------------------------------------------------------------
def pack_params(p, compute_dtype=jnp.bfloat16):
    state_dim, h1 = p["ew1_s"].shape
    action_dim = p["ew1_a"].shape[0]
    z_dim = p["mw"].shape[1]
    h2 = p["ew2"].shape[1]
    H1P, H2P = _round_up(h1, LANE), _round_up(h2, LANE)

    def pad_to(w, rows, cols):
        out = jnp.zeros((rows, cols), jnp.float32)
        return out.at[:w.shape[0], :w.shape[1]].set(w)

    cd = compute_dtype
    return {
        "w1s": pad_to(p["ew1_s"], state_dim, H1P).astype(cd),
        "w1a": pad_to(p["ew1_a"], action_dim, H1P).astype(cd),
        "b1": pad_to(p["eb1"], 1, H1P),
        "w2": pad_to(p["ew2"], H1P, H2P).astype(cd),
        "b2": pad_to(p["eb2"], 1, H2P),
        "wm": pad_to(p["mw"], H2P, z_dim).astype(cd),
        "bm": p["mb"].astype(jnp.float32),
        "wl": pad_to(p["lw"], H2P, z_dim).astype(cd),
        "bl": p["lb"].astype(jnp.float32),
        "dw1s": pad_to(p["dw1_s"], state_dim, H2P).astype(cd),
        "dw1z": pad_to(p["dw1_z"], z_dim, H2P).astype(cd),
        "db1": pad_to(p["db1"], 1, H2P),
        "dw2": pad_to(p["dw2"], H2P, H1P).astype(cd),
        "db2": pad_to(p["db2"], 1, H1P),
        "aw": pad_to(p["aw"], H1P, action_dim).astype(cd),
        "ab": p["ab"].astype(jnp.float32),
    }


# ---------------------------------------------------------------------------
# Wrapper: batch-tiled pallas_call (grid over batch only; weights resident)
# ---------------------------------------------------------------------------
@functools.partial(jax.jit, static_argnames=("tile_b",))
def vae_forward(packed, state, action, eps, *, tile_b=1024):
    """Fused VAE forward.

    Returns (decoded (B, action_dim), mean (B, z_dim), std (B, z_dim)), f32.
    """
    B, state_dim = state.shape
    action_dim = action.shape[1]
    z_dim = eps.shape[1]
    compute_dtype = packed["w2"].dtype
    H1P, H2P = packed["w2"].shape
    OW = _round_up(action_dim + 2 * z_dim, LANE)   # one lane-dense output group

    # Batch tiling (no host-side batch padding; boundary blocks are clipped).
    B8 = _round_up(B, SUBLANE)
    TB = _round_up(min(tile_b, B8), SUBLANE)
    nc = _num_tensorcores()
    if nc > 1 and B8 >= nc * SUBLANE:
        # v7x megacore: keep >= nc grid steps so the 'parallel' axis splits.
        TB = min(TB, _round_up(pl.cdiv(B8, nc), SUBLANE))
    grid_b = pl.cdiv(B8, TB)

    weight_keys = ("w1s", "w1a", "b1", "w2", "b2", "wm", "bm", "wl", "bl",
                   "dw1s", "dw1z", "db1", "dw2", "db2", "aw", "ab")
    weights = tuple(packed[k] for k in weight_keys)

    kernel = functools.partial(_vae_kernel, action_dim=action_dim, z_dim=z_dim,
                               compute_dtype=compute_dtype)

    flops = 2 * B * ((state_dim + action_dim) * H1P + H1P * H2P
                     + 2 * H2P * z_dim + (state_dim + z_dim) * H2P
                     + H2P * H1P + H1P * action_dim)
    transcendentals = B * (z_dim + action_dim)          # exp + tanh
    bytes_accessed = (sum(int(a.size) * a.dtype.itemsize
                          for a in (state, action, eps))
                      + B * OW * 4
                      + sum(int(w.size) * w.dtype.itemsize for w in weights))

    out = pl.pallas_call(
        kernel,
        out_shape=jax.ShapeDtypeStruct((B, OW), jnp.float32),
        grid=(grid_b,),
        in_specs=(
            [pl.BlockSpec((TB, state_dim), lambda i: (i, 0)),
             pl.BlockSpec((TB, action_dim), lambda i: (i, 0)),
             pl.BlockSpec((TB, z_dim), lambda i: (i, 0))]
            # Weights: constant index_map -> fetched once, VMEM-resident.
            + [pl.BlockSpec(w.shape, lambda i: (0, 0)) for w in weights]
        ),
        out_specs=pl.BlockSpec((TB, OW), lambda i: (i, 0)),
        compiler_params=pltpu.CompilerParams(
            dimension_semantics=("parallel",)),
        cost_estimate=pl.CostEstimate(
            flops=flops, transcendentals=transcendentals,
            bytes_accessed=bytes_accessed),
    )(state, action, eps, *weights)

    decoded = out[:, :action_dim]
    mean = out[:, action_dim:action_dim + z_dim]
    std = out[:, action_dim + z_dim:action_dim + 2 * z_dim]
    return decoded, mean, std


# ---------------------------------------------------------------------------
# Deterministic parameter init (PyTorch nn.Linear default: U(-1/sqrt(fan_in), +))
# ---------------------------------------------------------------------------
def init_params(key, state_dim, action_dim, z_dim, hidden):
    h1, h2 = hidden  # encoder: h1 -> h2 ; decoder (reversed): h2 -> h1

    def linear(key, fan_in, fan_out):
        kw, kb = jax.random.split(key)
        bound = 1.0 / jnp.sqrt(fan_in)
        w = jax.random.uniform(kw, (fan_in, fan_out), jnp.float32, -bound, bound)
        b = jax.random.uniform(kb, (1, fan_out), jnp.float32, -bound, bound)
        return w, b

    keys = jax.random.split(key, 7)
    ew1, eb1 = linear(keys[0], state_dim + action_dim, h1)
    ew2, eb2 = linear(keys[1], h1, h2)
    mw, mb = linear(keys[2], h2, z_dim)
    lw, lb = linear(keys[3], h2, z_dim)
    dw1, db1 = linear(keys[4], state_dim + z_dim, h2)
    dw2, db2 = linear(keys[5], h2, h1)
    aw, ab = linear(keys[6], h1, action_dim)

    return {
        "ew1_s": ew1[:state_dim], "ew1_a": ew1[state_dim:], "eb1": eb1,
        "ew2": ew2, "eb2": eb2,
        "mw": mw, "mb": mb,
        "lw": lw, "lb": lb,
        "dw1_s": dw1[:state_dim], "dw1_z": dw1[state_dim:], "db1": db1,
        "dw2": dw2, "db2": db2,
        "aw": aw, "ab": ab,
    }


# ---------------------------------------------------------------------------
# Pure-JAX reference (mirrors the PyTorch forward) for a sanity check
# ---------------------------------------------------------------------------
def vae_forward_ref(params, state, action, eps):
    h = jnp.concatenate([state, action], axis=1)
    w1 = jnp.concatenate([params["ew1_s"], params["ew1_a"]], axis=0)
    h = jnp.maximum(h @ w1 + params["eb1"], 0.0)
    h = jnp.maximum(h @ params["ew2"] + params["eb2"], 0.0)
    mean = h @ params["mw"] + params["mb"]
    std = jnp.exp(h @ params["lw"] + params["lb"])
    z = mean + std * eps
    d = jnp.concatenate([state, z], axis=1)
    dw1 = jnp.concatenate([params["dw1_s"], params["dw1_z"]], axis=0)
    d = jnp.maximum(d @ dw1 + params["db1"], 0.0)
    d = jnp.maximum(d @ params["dw2"] + params["db2"], 0.0)
    act = jnp.tanh(d @ params["aw"] + params["ab"])
    return act, mean, std


if __name__ == "__main__":
    # Small shapes consistent with the module's forward.
    B, STATE_DIM, ACTION_DIM, Z_DIM = 8, 12, 4, 6
    HIDDEN = (32, 32)

    root = jax.random.PRNGKey(0)
    k_params, k_state, k_action, k_eps, k_big = jax.random.split(root, 5)

    params = init_params(k_params, STATE_DIM, ACTION_DIM, Z_DIM, HIDDEN)

    state = jax.random.normal(k_state, (B, STATE_DIM), jnp.float32)
    action = jnp.tanh(jax.random.normal(k_action, (B, ACTION_DIM), jnp.float32))
    eps = jax.random.normal(k_eps, (B, Z_DIM), jnp.float32)  # randn_like(std)

    # --- exact-parity f32 path, single tile ---
    packed_f32 = pack_params(params, compute_dtype=jnp.float32)
    decoded, mean, std = vae_forward(packed_f32, state, action, eps)
    jax.block_until_ready((decoded, mean, std))
    d_ref, m_ref, s_ref = vae_forward_ref(params, state, action, eps)
    assert decoded.shape == (B, ACTION_DIM)
    assert mean.shape == (B, Z_DIM) and std.shape == (B, Z_DIM)
    assert jnp.allclose(decoded, d_ref, atol=1e-5, rtol=1e-5)
    assert jnp.allclose(mean, m_ref, atol=1e-5, rtol=1e-5)
    assert jnp.allclose(std, s_ref, atol=1e-5, rtol=1e-5)

    # --- f32 path, multi-step grid, batch that is not a tile multiple ---
    B2 = 300
    ks1, ks2, ks3 = jax.random.split(k_big, 3)
    state2 = jax.random.normal(ks1, (B2, STATE_DIM), jnp.float32)
    action2 = jnp.tanh(jax.random.normal(ks2, (B2, ACTION_DIM), jnp.float32))
    eps2 = jax.random.normal(ks3, (B2, Z_DIM), jnp.float32)
    d2, m2, s2 = vae_forward(packed_f32, state2, action2, eps2, tile_b=128)
    jax.block_until_ready((d2, m2, s2))
    d2r, m2r, s2r = vae_forward_ref(params, state2, action2, eps2)
    assert jnp.allclose(d2, d2r, atol=1e-5, rtol=1e-5)
    assert jnp.allclose(m2, m2r, atol=1e-5, rtol=1e-5)
    assert jnp.allclose(s2, s2r, atol=1e-5, rtol=1e-5)

    # --- default bf16-operand path (MXU-native), f32 accumulation & outputs ---
    packed_bf16 = pack_params(params)            # compute_dtype defaults to bf16
    d3, m3, s3 = vae_forward(packed_bf16, state2, action2, eps2)
    jax.block_until_ready((d3, m3, s3))
    # observed drift is ~1e-2 from bf16 weights/activations; keep tolerance loose
    assert jnp.allclose(d3, d2r, atol=1e-1, rtol=1e-1)
    assert jnp.allclose(m3, m2r, atol=1e-1, rtol=1e-1)
    assert jnp.allclose(s3, s2r, atol=1e-1, rtol=1e-1)

    print("KERNEL_OK")
</pallas_src>

<mosaic_0001>
module attributes {stable_mosaic.version = 11 : i64} {
  func.func @_vae_kernel(%arg0: i32, %arg1: memref<8x12xf32, #tpu.memory_space<vmem>>, %arg2: memref<8x4xf32, #tpu.memory_space<vmem>>, %arg3: memref<8x6xf32, #tpu.memory_space<vmem>>, %arg4: memref<12x128xf32, #tpu.memory_space<vmem>>, %arg5: memref<4x128xf32, #tpu.memory_space<vmem>>, %arg6: memref<1x128xf32, #tpu.memory_space<vmem>>, %arg7: memref<128x128xf32, #tpu.memory_space<vmem>>, %arg8: memref<1x128xf32, #tpu.memory_space<vmem>>, %arg9: memref<128x6xf32, #tpu.memory_space<vmem>>, %arg10: memref<1x6xf32, #tpu.memory_space<vmem>>, %arg11: memref<128x6xf32, #tpu.memory_space<vmem>>, %arg12: memref<1x6xf32, #tpu.memory_space<vmem>>, %arg13: memref<12x128xf32, #tpu.memory_space<vmem>>, %arg14: memref<6x128xf32, #tpu.memory_space<vmem>>, %arg15: memref<1x128xf32, #tpu.memory_space<vmem>>, %arg16: memref<128x128xf32, #tpu.memory_space<vmem>>, %arg17: memref<1x128xf32, #tpu.memory_space<vmem>>, %arg18: memref<128x4xf32, #tpu.memory_space<vmem>>, %arg19: memref<1x4xf32, #tpu.memory_space<vmem>>, %arg20: memref<8x128xf32, #tpu.memory_space<vmem>>) attributes {dimension_semantics = [#tpu.dimension_semantics<parallel>], iteration_bounds = array<i64: 1>, scalar_prefetch = 0 : i64, scratch_operands = 0 : i64, tpu.core_type = #tpu.core_type<tc>, window_params = [{transform_indices = @transform_0, window_bounds = array<i64: 8, 12>}, {transform_indices = @transform_1, window_bounds = array<i64: 8, 4>}, {transform_indices = @transform_2, window_bounds = array<i64: 8, 6>}, {pipeline_mode = #tpu.pipeline_mode<synchronous>, transform_indices = @transform_3, window_bounds = array<i64: 12, 128>}, {pipeline_mode = #tpu.pipeline_mode<synchronous>, transform_indices = @transform_4, window_bounds = array<i64: 4, 128>}, {pipeline_mode = #tpu.pipeline_mode<synchronous>, transform_indices = @transform_5, window_bounds = array<i64: 1, 128>}, {pipeline_mode = #tpu.pipeline_mode<synchronous>, transform_indices = @transform_6, window_bounds = array<i64: 128, 128>}, {pipeline_mode = #tpu.pipeline_mode<synchronous>, transform_indices = @transform_7, window_bounds = array<i64: 1, 128>}, {pipeline_mode = #tpu.pipeline_mode<synchronous>, transform_indices = @transform_8, window_bounds = array<i64: 128, 6>}, {pipeline_mode = #tpu.pipeline_mode<synchronous>, transform_indices = @transform_9, window_bounds = array<i64: 1, 6>}, {pipeline_mode = #tpu.pipeline_mode<synchronous>, transform_indices = @transform_10, window_bounds = array<i64: 128, 6>}, {pipeline_mode = #tpu.pipeline_mode<synchronous>, transform_indices = @transform_11, window_bounds = array<i64: 1, 6>}, {pipeline_mode = #tpu.pipeline_mode<synchronous>, transform_indices = @transform_12, window_bounds = array<i64: 12, 128>}, {pipeline_mode = #tpu.pipeline_mode<synchronous>, transform_indices = @transform_13, window_bounds = array<i64: 6, 128>}, {pipeline_mode = #tpu.pipeline_mode<synchronous>, transform_indices = @transform_14, window_bounds = array<i64: 1, 128>}, {pipeline_mode = #tpu.pipeline_mode<synchronous>, transform_indices = @transform_15, window_bounds = array<i64: 128, 128>}, {pipeline_mode = #tpu.pipeline_mode<synchronous>, transform_indices = @transform_16, window_bounds = array<i64: 1, 128>}, {pipeline_mode = #tpu.pipeline_mode<synchronous>, transform_indices = @transform_17, window_bounds = array<i64: 128, 4>}, {pipeline_mode = #tpu.pipeline_mode<synchronous>, transform_indices = @transform_18, window_bounds = array<i64: 1, 4>}, {transform_indices = @transform_19, window_bounds = array<i64: 8, 128>}]} {
    %c0 = arith.constant 0 : index
    %c0_0 = arith.constant 0 : index
    %0 = vector.load %arg1[%c0, %c0_0] : memref<8x12xf32, #tpu.memory_space<vmem>>, vector<8x12xf32>
    %c0_1 = arith.constant 0 : index
    %c0_2 = arith.constant 0 : index
    %1 = vector.load %arg2[%c0_1, %c0_2] : memref<8x4xf32, #tpu.memory_space<vmem>>, vector<8x4xf32>
    %c0_3 = arith.constant 0 : index
    %c0_4 = arith.constant 0 : index
    %2 = vector.load %arg3[%c0_3, %c0_4] : memref<8x6xf32, #tpu.memory_space<vmem>>, vector<8x6xf32>
    %c0_5 = arith.constant 0 : index
    %c0_6 = arith.constant 0 : index
    %3 = vector.load %arg4[%c0_5, %c0_6] : memref<12x128xf32, #tpu.memory_space<vmem>>, vector<12x128xf32>
    %cst = arith.constant dense<0.000000e+00> : vector<8x128xf32>
    %4 = tpu.matmul %0, %3, %cst {dimension_numbers = #tpu.dot_dimension_numbers<[1], [0], [0], [1], [0, 0, 1, 1], [], []>} : vector<8x12xf32>, vector<12x128xf32>, vector<8x128xf32> -> vector<8x128xf32>
    %c0_7 = arith.constant 0 : index
    %c0_8 = arith.constant 0 : index
    %5 = vector.load %arg5[%c0_7, %c0_8] : memref<4x128xf32, #tpu.memory_space<vmem>>, vector<4x128xf32>
    %cst_9 = arith.constant dense<0.000000e+00> : vector<8x128xf32>
    %6 = tpu.matmul %1, %5, %cst_9 {dimension_numbers = #tpu.dot_dimension_numbers<[1], [0], [0], [1], [0, 0, 1, 1], [], []>} : vector<8x4xf32>, vector<4x128xf32>, vector<8x128xf32> -> vector<8x128xf32>
    %7 = arith.addf %4, %6 : vector<8x128xf32>
    %c0_10 = arith.constant 0 : index
    %c0_11 = arith.constant 0 : index
    %8 = vector.load %arg6[%c0_10, %c0_11] : memref<1x128xf32, #tpu.memory_space<vmem>>, vector<1x128xf32>
    %9 = vector.broadcast %8 : vector<1x128xf32> to vector<8x128xf32>
    %10 = arith.addf %7, %9 : vector<8x128xf32>
    %cst_12 = arith.constant 0.000000e+00 : f32
    %11 = vector.broadcast %cst_12 : f32 to vector<8x128xf32>
    %12 = arith.maximumf %10, %11 : vector<8x128xf32>
    %c0_13 = arith.constant 0 : index
    %c0_14 = arith.constant 0 : index
    %13 = vector.load %arg7[%c0_13, %c0_14] : memref<128x128xf32, #tpu.memory_space<vmem>>, vector<128x128xf32>
    %cst_15 = arith.constant dense<0.000000e+00> : vector<8x128xf32>
    %14 = tpu.matmul %12, %13, %cst_15 {dimension_numbers = #tpu.dot_dimension_numbers<[1], [0], [0], [1], [0, 0, 1, 1], [], []>} : vector<8x128xf32>, vector<128x128xf32>, vector<8x128xf32> -> vector<8x128xf32>
    %c0_16 = arith.constant 0 : index
    %c0_17 = arith.constant 0 : index
    %15 = vector.load %arg8[%c0_16, %c0_17] : memref<1x128xf32, #tpu.memory_space<vmem>>, vector<1x128xf32>
    %16 = vector.broadcast %15 : vector<1x128xf32> to vector<8x128xf32>
    %17 = arith.addf %14, %16 : vector<8x128xf32>
    %cst_18 = arith.constant 0.000000e+00 : f32
    %18 = vector.broadcast %cst_18 : f32 to vector<8x128xf32>
    %19 = arith.maximumf %17, %18 : vector<8x128xf32>
    %c0_19 = arith.constant 0 : index
    %c0_20 = arith.constant 0 : index
    %20 = vector.load %arg9[%c0_19, %c0_20] : memref<128x6xf32, #tpu.memory_space<vmem>>, vector<128x6xf32>
    %cst_21 = arith.constant dense<0.000000e+00> : vector<8x6xf32>
    %21 = tpu.matmul %19, %20, %cst_21 {dimension_numbers = #tpu.dot_dimension_numbers<[1], [0], [0], [1], [0, 0, 1, 1], [], []>} : vector<8x128xf32>, vector<128x6xf32>, vector<8x6xf32> -> vector<8x6xf32>
    %c0_22 = arith.constant 0 : index
    %c0_23 = arith.constant 0 : index
    %22 = vector.load %arg10[%c0_22, %c0_23] : memref<1x6xf32, #tpu.memory_space<vmem>>, vector<1x6xf32>
    %23 = vector.broadcast %22 : vector<1x6xf32> to vector<8x6xf32>
    %24 = arith.addf %21, %23 : vector<8x6xf32>
    %c0_24 = arith.constant 0 : index
    %c0_25 = arith.constant 0 : index
    %25 = vector.load %arg11[%c0_24, %c0_25] : memref<128x6xf32, #tpu.memory_space<vmem>>, vector<128x6xf32>
    %cst_26 = arith.constant dense<0.000000e+00> : vector<8x6xf32>
    %26 = tpu.matmul %19, %25, %cst_26 {dimension_numbers = #tpu.dot_dimension_numbers<[1], [0], [0], [1], [0, 0, 1, 1], [], []>} : vector<8x128xf32>, vector<128x6xf32>, vector<8x6xf32> -> vector<8x6xf32>
    %c0_27 = arith.constant 0 : index
    %c0_28 = arith.constant 0 : index
    %27 = vector.load %arg12[%c0_27, %c0_28] : memref<1x6xf32, #tpu.memory_space<vmem>>, vector<1x6xf32>
    %28 = vector.broadcast %27 : vector<1x6xf32> to vector<8x6xf32>
    %29 = arith.addf %26, %28 : vector<8x6xf32>
    %30 = math.exp %29 : vector<8x6xf32>
    %31 = arith.mulf %30, %2 : vector<8x6xf32>
    %32 = arith.addf %24, %31 : vector<8x6xf32>
    %c0_29 = arith.constant 0 : index
    %c0_30 = arith.constant 0 : index
    %33 = vector.load %arg13[%c0_29, %c0_30] : memref<12x128xf32, #tpu.memory_space<vmem>>, vector<12x128xf32>
    %cst_31 = arith.constant dense<0.000000e+00> : vector<8x128xf32>
    %34 = tpu.matmul %0, %33, %cst_31 {dimension_numbers = #tpu.dot_dimension_numbers<[1], [0], [0], [1], [0, 0, 1, 1], [], []>} : vector<8x12xf32>, vector<12x128xf32>, vector<8x128xf32> -> vector<8x128xf32>
    %c0_32 = arith.constant 0 : index
    %c0_33 = arith.constant 0 : index
    %35 = vector.load %arg14[%c0_32, %c0_33] : memref<6x128xf32, #tpu.memory_space<vmem>>, vector<6x128xf32>
    %cst_34 = arith.constant dense<0.000000e+00> : vector<8x128xf32>
    %36 = tpu.matmul %32, %35, %cst_34 {dimension_numbers = #tpu.dot_dimension_numbers<[1], [0], [0], [1], [0, 0, 1, 1], [], []>} : vector<8x6xf32>, vector<6x128xf32>, vector<8x128xf32> -> vector<8x128xf32>
    %37 = arith.addf %34, %36 : vector<8x128xf32>
    %c0_35 = arith.constant 0 : index
    %c0_36 = arith.constant 0 : index
    %38 = vector.load %arg15[%c0_35, %c0_36] : memref<1x128xf32, #tpu.memory_space<vmem>>, vector<1x128xf32>
    %39 = vector.broadcast %38 : vector<1x128xf32> to vector<8x128xf32>
    %40 = arith.addf %37, %39 : vector<8x128xf32>
    %cst_37 = arith.constant 0.000000e+00 : f32
    %41 = vector.broadcast %cst_37 : f32 to vector<8x128xf32>
    %42 = arith.maximumf %40, %41 : vector<8x128xf32>
    %c0_38 = arith.constant 0 : index
    %c0_39 = arith.constant 0 : index
    %43 = vector.load %arg16[%c0_38, %c0_39] : memref<128x128xf32, #tpu.memory_space<vmem>>, vector<128x128xf32>
    %cst_40 = arith.constant dense<0.000000e+00> : vector<8x128xf32>
    %44 = tpu.matmul %42, %43, %cst_40 {dimension_numbers = #tpu.dot_dimension_numbers<[1], [0], [0], [1], [0, 0, 1, 1], [], []>} : vector<8x128xf32>, vector<128x128xf32>, vector<8x128xf32> -> vector<8x128xf32>
    %c0_41 = arith.constant 0 : index
    %c0_42 = arith.constant 0 : index
    %45 = vector.load %arg17[%c0_41, %c0_42] : memref<1x128xf32, #tpu.memory_space<vmem>>, vector<1x128xf32>
    %46 = vector.broadcast %45 : vector<1x128xf32> to vector<8x128xf32>
    %47 = arith.addf %44, %46 : vector<8x128xf32>
    %cst_43 = arith.constant 0.000000e+00 : f32
    %48 = vector.broadcast %cst_43 : f32 to vector<8x128xf32>
    %49 = arith.maximumf %47, %48 : vector<8x128xf32>
    %c0_44 = arith.constant 0 : index
    %c0_45 = arith.constant 0 : index
    %50 = vector.load %arg18[%c0_44, %c0_45] : memref<128x4xf32, #tpu.memory_space<vmem>>, vector<128x4xf32>
    %cst_46 = arith.constant dense<0.000000e+00> : vector<8x4xf32>
    %51 = tpu.matmul %49, %50, %cst_46 {dimension_numbers = #tpu.dot_dimension_numbers<[1], [0], [0], [1], [0, 0, 1, 1], [], []>} : vector<8x128xf32>, vector<128x4xf32>, vector<8x4xf32> -> vector<8x4xf32>
    %c0_47 = arith.constant 0 : index
    %c0_48 = arith.constant 0 : index
    %52 = vector.load %arg19[%c0_47, %c0_48] : memref<1x4xf32, #tpu.memory_space<vmem>>, vector<1x4xf32>
    %53 = vector.broadcast %52 : vector<1x4xf32> to vector<8x4xf32>
    %54 = arith.addf %51, %53 : vector<8x4xf32>
    %55 = math.tanh %54 : vector<8x4xf32>
    %cst_49 = arith.constant 0.000000e+00 : f32
    %56 = vector.broadcast %cst_49 : f32 to vector<8x128xf32>
    %c0_50 = arith.constant 0 : index
    %c0_51 = arith.constant 0 : index
    %57 = vector.load %arg20[%c0_50, %c0_51] : memref<8x128xf32, #tpu.memory_space<vmem>>, vector<8x128xf32>
    tpu.vector_store %arg20[%c0_50, %c0_51], %56 {strides = array<i32>} : memref<8x128xf32, #tpu.memory_space<vmem>>, vector<8x128xf32>,
    %c0_52 = arith.constant 0 : index
    %c0_53 = arith.constant 0 : index
    %58 = vector.load %arg20[%c0_52, %c0_53] : memref<8x128xf32, #tpu.memory_space<vmem>>, vector<8x4xf32>
    tpu.vector_store %arg20[%c0_52, %c0_53], %55 {strides = array<i32>} : memref<8x128xf32, #tpu.memory_space<vmem>>, vector<8x4xf32>,
    %c0_54 = arith.constant 0 : index
    %c4 = arith.constant 4 : index
    %59 = vector.load %arg20[%c0_54, %c4] : memref<8x128xf32, #tpu.memory_space<vmem>>, vector<8x6xf32>
    tpu.vector_store %arg20[%c0_54, %c4], %24 {strides = array<i32>} : memref<8x128xf32, #tpu.memory_space<vmem>>, vector<8x6xf32>,
    %c0_55 = arith.constant 0 : index
    %c10 = arith.constant 10 : index
    %60 = vector.load %arg20[%c0_55, %c10] : memref<8x128xf32, #tpu.memory_space<vmem>>, vector<8x6xf32>
    tpu.vector_store %arg20[%c0_55, %c10], %30 {strides = array<i32>} : memref<8x128xf32, #tpu.memory_space<vmem>>, vector<8x6xf32>,
    return
  }
  func.func @transform_0(%arg0: i32) -> (i32, i32) {
    %c0_i32 = arith.constant 0 : i32
    %c0_i32_0 = arith.constant 0 : i32
    return %arg0, %c0_i32 : i32, i32
  }
  func.func @transform_1(%arg0: i32) -> (i32, i32) {
    %c0_i32 = arith.constant 0 : i32
    %c0_i32_0 = arith.constant 0 : i32
    return %arg0, %c0_i32 : i32, i32
  }
  func.func @transform_2(%arg0: i32) -> (i32, i32) {
    %c0_i32 = arith.constant 0 : i32
    %c0_i32_0 = arith.constant 0 : i32
    return %arg0, %c0_i32 : i32, i32
  }
  func.func @transform_3(%arg0: i32) -> (i32, i32) {
    %c0_i32 = arith.constant 0 : i32
    %c0_i32_0 = arith.constant 0 : i32
    %c0_i32_1 = arith.constant 0 : i32
    return %c0_i32, %c0_i32_0 : i32, i32
  }
  func.func @transform_4(%arg0: i32) -> (i32, i32) {
    %c0_i32 = arith.constant 0 : i32
    %c0_i32_0 = arith.constant 0 : i32
    %c0_i32_1 = arith.constant 0 : i32
    return %c0_i32, %c0_i32_0 : i32, i32
  }
  func.func @transform_5(%arg0: i32) -> (i32, i32) {
    %c0_i32 = arith.constant 0 : i32
    %c0_i32_0 = arith.constant 0 : i32
    %c0_i32_1 = arith.constant 0 : i32
    return %c0_i32, %c0_i32_0 : i32, i32
  }
  func.func @transform_6(%arg0: i32) -> (i32, i32) {
    %c0_i32 = arith.constant 0 : i32
    %c0_i32_0 = arith.constant 0 : i32
    %c0_i32_1 = arith.constant 0 : i32
    return %c0_i32, %c0_i32_0 : i32, i32
  }
  func.func @transform_7(%arg0: i32) -> (i32, i32) {
    %c0_i32 = arith.constant 0 : i32
    %c0_i32_0 = arith.constant 0 : i32
    %c0_i32_1 = arith.constant 0 : i32
    return %c0_i32, %c0_i32_0 : i32, i32
  }
  func.func @transform_8(%arg0: i32) -> (i32, i32) {
    %c0_i32 = arith.constant 0 : i32
    %c0_i32_0 = arith.constant 0 : i32
    %c0_i32_1 = arith.constant 0 : i32
    return %c0_i32, %c0_i32_0 : i32, i32
  }
  func.func @transform_9(%arg0: i32) -> (i32, i32) {
    %c0_i32 = arith.constant 0 : i32
    %c0_i32_0 = arith.constant 0 : i32
    %c0_i32_1 = arith.constant 0 : i32
    return %c0_i32, %c0_i32_0 : i32, i32
  }
  func.func @transform_10(%arg0: i32) -> (i32, i32) {
    %c0_i32 = arith.constant 0 : i32
    %c0_i32_0 = arith.constant 0 : i32
    %c0_i32_1 = arith.constant 0 : i32
    return %c0_i32, %c0_i32_0 : i32, i32
  }
  func.func @transform_11(%arg0: i32) -> (i32, i32) {
    %c0_i32 = arith.constant 0 : i32
    %c0_i32_0 = arith.constant 0 : i32
    %c0_i32_1 = arith.constant 0 : i32
    return %c0_i32, %c0_i32_0 : i32, i32
  }
  func.func @transform_12(%arg0: i32) -> (i32, i32) {
    %c0_i32 = arith.constant 0 : i32
    %c0_i32_0 = arith.constant 0 : i32
    %c0_i32_1 = arith.constant 0 : i32
    return %c0_i32, %c0_i32_0 : i32, i32
  }
  func.func @transform_13(%arg0: i32) -> (i32, i32) {
    %c0_i32 = arith.constant 0 : i32
    %c0_i32_0 = arith.constant 0 : i32
    %c0_i32_1 = arith.constant 0 : i32
    return %c0_i32, %c0_i32_0 : i32, i32
  }
  func.func @transform_14(%arg0: i32) -> (i32, i32) {
    %c0_i32 = arith.constant 0 : i32
    %c0_i32_0 = arith.constant 0 : i32
    %c0_i32_1 = arith.constant 0 : i32
    return %c0_i32, %c0_i32_0 : i32, i32
  }
  func.func @transform_15(%arg0: i32) -> (i32, i32) {
    %c0_i32 = arith.constant 0 : i32
    %c0_i32_0 = arith.constant 0 : i32
    %c0_i32_1 = arith.constant 0 : i32
    return %c0_i32, %c0_i32_0 : i32, i32
  }
  func.func @transform_16(%arg0: i32) -> (i32, i32) {
    %c0_i32 = arith.constant 0 : i32
    %c0_i32_0 = arith.constant 0 : i32
    %c0_i32_1 = arith.constant 0 : i32
    return %c0_i32, %c0_i32_0 : i32, i32
  }
  func.func @transform_17(%arg0: i32) -> (i32, i32) {
    %c0_i32 = arith.constant 0 : i32
    %c0_i32_0 = arith.constant 0 : i32
    %c0_i32_1 = arith.constant 0 : i32
    return %c0_i32, %c0_i32_0 : i32, i32
  }
  func.func @transform_18(%arg0: i32) -> (i32, i32) {
    %c0_i32 = arith.constant 0 : i32
    %c0_i32_0 = arith.constant 0 : i32
    %c0_i32_1 = arith.constant 0 : i32
    return %c0_i32, %c0_i32_0 : i32, i32
  }
  func.func @transform_19(%arg0: i32) -> (i32, i32) {
    %c0_i32 = arith.constant 0 : i32
    %c0_i32_0 = arith.constant 0 : i32
    return %arg0, %c0_i32 : i32, i32
  }
}

</mosaic_0001>

<llo_original>
// kernel: vae_forward.1
$region0: #{vae_forward.1}
  #allocation0 [shape = 'u32[]', space=smem, size = 0x4, offset = 0x4, fixed_abs, tag = 'smem constant byte address 0x4 - core index']
  #allocation1 [shape = 'u32[144,128]{1,0:T(1,128)}', space=vmem, size = 0x12000, scoped, tag = 'internal scratch']
  %s0 = inlined_call_operand.vmem [shape: f32[8,12], index: 0, kind: input, shape index: {}]
  %s1 = inlined_call_operand.vmem [shape: f32[8,4], index: 1, kind: input, shape index: {}]
  %s2 = inlined_call_operand.vmem [shape: f32[8,6], index: 2, kind: input, shape index: {}]
  %s3 = inlined_call_operand.vmem [shape: f32[12,128], index: 3, kind: input, shape index: {}]
  %s4 = inlined_call_operand.vmem [shape: f32[4,128], index: 4, kind: input, shape index: {}]
  %s5 = inlined_call_operand.vmem [shape: f32[1,128], index: 5, kind: input, shape index: {}]
  %s6 = inlined_call_operand.vmem [shape: f32[128,128], index: 6, kind: input, shape index: {}]
  %s7 = inlined_call_operand.vmem [shape: f32[1,128], index: 7, kind: input, shape index: {}]
  %s8 = inlined_call_operand.vmem [shape: f32[128,6], index: 8, kind: input, shape index: {}]
  %s9 = inlined_call_operand.vmem [shape: f32[1,6], index: 9, kind: input, shape index: {}]
  %s10 = inlined_call_operand.vmem [shape: f32[128,6], index: 10, kind: input, shape index: {}]
  %s11 = inlined_call_operand.vmem [shape: f32[1,6], index: 11, kind: input, shape index: {}]
  %s12 = inlined_call_operand.vmem [shape: f32[12,128], index: 12, kind: input, shape index: {}]
  %s13 = inlined_call_operand.vmem [shape: f32[6,128], index: 13, kind: input, shape index: {}]
  %s14 = inlined_call_operand.vmem [shape: f32[1,128], index: 14, kind: input, shape index: {}]
  %s15 = inlined_call_operand.vmem [shape: f32[128,128], index: 15, kind: input, shape index: {}]
  %s16 = inlined_call_operand.vmem [shape: f32[1,128], index: 16, kind: input, shape index: {}]
  %s17 = inlined_call_operand.vmem [shape: f32[128,4], index: 17, kind: input, shape index: {}]
  %s18 = inlined_call_operand.vmem [shape: f32[1,4], index: 18, kind: input, shape index: {}]
  %s19 = inlined_call_operand.vmem [shape: f32[8,128], index: 19, kind: output, shape index: {}]
  %s20 = sld [smem:[#allocation0]]
  $region86: #{vae_forward.1} parent=0
    _
  %s22 = ssub.s32 1, %s20
  %s23 = scalar_select 0, %s22, %s20
  // Predicated region
  $region2: #{vae_forward.1} parent=0 // pred_check
    _
  $region3: #{vae_forward.1} parent=0 // pred_check_branch
    %25 = sbr.rel (0) target = $region5
  $region4: #{vae_forward.1} parent=0 // pred_region
    _
  $region5: #{vae_forward.1} parent=0 // pred_fallthru
    _
  // Predicated region
  $region6: #{vae_forward.1} parent=0 // pred_check
    _
  $region7: #{vae_forward.1} parent=0 // pred_check_branch
    %27 = sbr.rel (0) target = $region9
  $region8: #{vae_forward.1} parent=0 // pred_region
    _
  $region9: #{vae_forward.1} parent=0 // pred_fallthru
    _
  // Predicated region
  $region10: #{vae_forward.1} parent=0 // pred_check
    _
  $region11: #{vae_forward.1} parent=0 // pred_check_branch
    %29 = sbr.rel (0) target = $region13
  $region12: #{vae_forward.1} parent=0 // pred_region
    _
  $region13: #{vae_forward.1} parent=0 // pred_fallthru
    _
  // Predicated region
  $region14: #{vae_forward.1} parent=0 // pred_check
    _
  $region15: #{vae_forward.1} parent=0 // pred_check_branch
    %31 = sbr.rel (0) target = $region17
  $region16: #{vae_forward.1} parent=0 // pred_region
    _
  $region17: #{vae_forward.1} parent=0 // pred_fallthru
    _
  // Predicated region
  $region18: #{vae_forward.1} parent=0 // pred_check
    _
  $region19: #{vae_forward.1} parent=0 // pred_check_branch
    %33 = sbr.rel (0) target = $region21
  $region20: #{vae_forward.1} parent=0 // pred_region
    _
  $region21: #{vae_forward.1} parent=0 // pred_fallthru
    _
  // Predicated region
  $region22: #{vae_forward.1} parent=0 // pred_check
    _
  $region23: #{vae_forward.1} parent=0 // pred_check_branch
    %35 = sbr.rel (0) target = $region25
  $region24: #{vae_forward.1} parent=0 // pred_region
    _
  $region25: #{vae_forward.1} parent=0 // pred_fallthru
    _
  // Predicated region
  $region26: #{vae_forward.1} parent=0 // pred_check
    _
  $region27: #{vae_forward.1} parent=0 // pred_check_branch
    %37 = sbr.rel (0) target = $region29
  $region28: #{vae_forward.1} parent=0 // pred_region
    _
  $region29: #{vae_forward.1} parent=0 // pred_fallthru
    _
  // Predicated region
  $region30: #{vae_forward.1} parent=0 // pred_check
    _
  $region31: #{vae_forward.1} parent=0 // pred_check_branch
    %39 = sbr.rel (0) target = $region33
  $region32: #{vae_forward.1} parent=0 // pred_region
    _
  $region33: #{vae_forward.1} parent=0 // pred_fallthru
    _
  // Predicated region
  $region34: #{vae_forward.1} parent=0 // pred_check
    _
  $region35: #{vae_forward.1} parent=0 // pred_check_branch
    %41 = sbr.rel (0) target = $region37
  $region36: #{vae_forward.1} parent=0 // pred_region
    _
  $region37: #{vae_forward.1} parent=0 // pred_fallthru
    _
  // Predicated region
  $region38: #{vae_forward.1} parent=0 // pred_check
    _
  $region39: #{vae_forward.1} parent=0 // pred_check_branch
    %43 = sbr.rel (0) target = $region41
  $region40: #{vae_forward.1} parent=0 // pred_region
    _
  $region41: #{vae_forward.1} parent=0 // pred_fallthru
    _
  // Predicated region
  $region42: #{vae_forward.1} parent=0 // pred_check
    _
  $region43: #{vae_forward.1} parent=0 // pred_check_branch
    %45 = sbr.rel (0) target = $region45
  $region44: #{vae_forward.1} parent=0 // pred_region
    _
  $region45: #{vae_forward.1} parent=0 // pred_fallthru
    _
  // Predicated region
  $region46: #{vae_forward.1} parent=0 // pred_check
    _
  $region47: #{vae_forward.1} parent=0 // pred_check_branch
    %47 = sbr.rel (0) target = $region49
  $region48: #{vae_forward.1} parent=0 // pred_region
    _
  $region49: #{vae_forward.1} parent=0 // pred_fallthru
    _
  // Predicated region
  $region50: #{vae_forward.1} parent=0 // pred_check
    _
  $region51: #{vae_forward.1} parent=0 // pred_check_branch
    %49 = sbr.rel (0) target = $region53
  $region52: #{vae_forward.1} parent=0 // pred_region
    _
  $region53: #{vae_forward.1} parent=0 // pred_fallthru
    _
  // Predicated region
  $region54: #{vae_forward.1} parent=0 // pred_check
    _
  $region55: #{vae_forward.1} parent=0 // pred_check_branch
    %51 = sbr.rel (0) target = $region57
  $region56: #{vae_forward.1} parent=0 // pred_region
    _
  $region57: #{vae_forward.1} parent=0 // pred_fallthru
    _
  // Predicated region
  $region58: #{vae_forward.1} parent=0 // pred_check
    _
  $region59: #{vae_forward.1} parent=0 // pred_check_branch
    %53 = sbr.rel (0) target = $region61
  $region60: #{vae_forward.1} parent=0 // pred_region
    _
  $region61: #{vae_forward.1} parent=0 // pred_fallthru
    _
  // Predicated region
  $region62: #{vae_forward.1} parent=0 // pred_check
    _
  $region63: #{vae_forward.1} parent=0 // pred_check_branch
    %55 = sbr.rel (0) target = $region65
  $region64: #{vae_forward.1} parent=0 // pred_region
    _
  $region65: #{vae_forward.1} parent=0 // pred_fallthru
    _
  // Predicated region
  $region66: #{vae_forward.1} parent=0 // pred_check
    _
  $region67: #{vae_forward.1} parent=0 // pred_check_branch
    %57 = sbr.rel (0) target = $region69
  $region68: #{vae_forward.1} parent=0 // pred_region
    _
  $region69: #{vae_forward.1} parent=0 // pred_fallthru
    _
  // Predicated region
  $region70: #{vae_forward.1} parent=0 // pred_check
    _
  $region71: #{vae_forward.1} parent=0 // pred_check_branch
    %59 = sbr.rel (0) target = $region73
  $region72: #{vae_forward.1} parent=0 // pred_region
    _
  $region73: #{vae_forward.1} parent=0 // pred_fallthru
    _
  // Predicated region
  $region74: #{vae_forward.1} parent=0 // pred_check
    _
  $region75: #{vae_forward.1} parent=0 // pred_check_branch
    %61 = sbr.rel (0) target = $region77
  $region76: #{vae_forward.1} parent=0 // pred_region
    _
  $region77: #{vae_forward.1} parent=0 // pred_fallthru
    _
  %v62 = vld [vmem:[%s0] sm:$0xff]
  %v63 = vld [vmem:[%s1] sm:$0xff]
  %v64 = vld [vmem:[%s2] sm:$0xff]
  %v65 = vld [vmem:[%s3] sm:$0xff]
  %v66 = vld [vmem:[%s3 + $0x8] sm:$0xf]
  %v67 = vld [vmem:[%s4] sm:$0xf]
  %vm68 = vcmask 31744
  %v70 = vsel %vm68, %v63, 0
  %vm72 = vcmask 1043456
  %v74 = vsel %vm72, %v67, 0
  %76 = vmatprep.subr.mxu0 0.0
  %77 = vmatpush1.msra.mxu0 %v74
  %78 = vmatprep.subr.mxu0 0.0
  %79 = vmatpush1.msra.mxu0 0.0
  %80 = vmatprep.subr.mxu0 0.0
  %81 = vmatpush1.msra.mxu0 0.0
  %82 = vmatprep.subr.mxu0 0.0
  %83 = vmatpush1.msra.mxu0 0.0
  %84 = vmatprep.subr.mxu0 0.0
  %85 = vmatpush1.msra.mxu0 0.0
  %86 = vmatprep.subr.mxu0 0.0
  %87 = vmatpush1.msra.mxu0 0.0
  %88 = vmatprep.subr.mxu0 0.0
  %89 = vmatpush1.msra.mxu0 0.0
  %90 = vmatprep.subr.mxu0 0.0
  %91 = vmatpush1.msra.mxu0 0.0
  %92 = vmatprep.subr.mxu0 0.0
  %93 = vmatpush1.msra.mxu0 0.0
  %94 = vmatprep.subr.mxu0 0.0
  %95 = vmatpush1.msra.mxu0 0.0
  %96 = vmatprep.subr.mxu0 0.0
  %97 = vmatpush1.msra.mxu0 0.0
  %98 = vmatprep.subr.mxu0 0.0
  %99 = vmatpush1.msra.mxu0 0.0
  %100 = vmatprep.subr.mxu0 0.0
  %101 = vmatpush1.msra.mxu0 0.0
  %102 = vmatprep.subr.mxu0 0.0
  %103 = vmatpush1.msra.mxu0 0.0
  %104 = vmatprep.subr.mxu0 0.0
  %105 = vmatpush1.msra.mxu0 0.0
  %106 = vmatprep.subr.mxu0 0.0
  %107 = vmatpush1.msra.mxu0 0.0
  %108 = vmatprep.subr.mxu0 0.0
  %109 = vmatpush1.msra.mxu0 0.0
  %110 = vmatprep.subr.mxu0 0.0
  %111 = vmatpush1.msra.mxu0 0.0
  %112 = vmatprep.subr.mxu0 0.0
  %113 = vmatpush1.msra.mxu0 0.0
  %114 = vmatprep.subr.mxu0 0.0
  %115 = vmatpush1.msra.mxu0 0.0
  %116 = vmatprep.subr.mxu0 0.0
  %117 = vmatpush1.msra.mxu0 0.0
  %118 = vmatprep.subr.mxu0 0.0
  %119 = vmatpush1.msra.mxu0 0.0
  %120 = vmatprep.subr.mxu0 0.0
  %121 = vmatpush1.msra.mxu0 0.0
  %122 = vmatprep.subr.mxu0 0.0
  %123 = vmatpush1.msra.mxu0 0.0
  %124 = vmatprep.subr.mxu0 0.0
  %125 = vmatpush1.msra.mxu0 0.0
  %126 = vmatprep.subr.mxu0 0.0
  %127 = vmatpush1.msra.mxu0 0.0
  %128 = vmatprep.subr.mxu0 0.0
  %129 = vmatpush1.msra.mxu0 0.0
  %130 = vmatprep.subr.mxu0 0.0
  %131 = vmatpush1.msra.mxu0 0.0
  %132 = vmatprep.subr.mxu0 0.0
  %133 = vmatpush1.msra.mxu0 0.0
  %134 = vmatprep.subr.mxu0 0.0
  %135 = vmatpush1.msra.mxu0 0.0
  %136 = vmatprep.subr.mxu0 0.0
  %137 = vmatpush1.msra.mxu0 0.0
  %138 = vmatprep.subr.mxu0 0.0
  %139 = vmatpush1.msra.mxu0 0.0
  %140 = vmatprep.mubr.f32.mxu0 0.0
  %141 = vmatmul.mubr.f32.gmra.mrb[0].mxu0 %v70
  %v142 = vpop.f32.mrb[0].mxu0
  %v143 = vadd.f32 0.0, %v142
  %v144 = vpop.f32.mrb[0].mxu0
  %145 = vdwg.mxu0
  %vm146 = vcmask 97280
  %v148 = vsel %vm146, %v62, 0
  %v151 = vsel %vm72, %v66, 0
  %153 = vmatprep.subr.mxu0 0.0
  %154 = vmatpush1.msra.mxu0 %v65
  %155 = vmatprep.subr.mxu0 0.0
  %156 = vmatpush1.msra.mxu0 %v151
  %157 = vmatprep.subr.mxu0 0.0
  %158 = vmatpush1.msra.mxu0 0.0
  %159 = vmatprep.subr.mxu0 0.0
  %160 = vmatpush1.msra.mxu0 0.0
  %161 = vmatprep.subr.mxu0 0.0
  %162 = vmatpush1.msra.mxu0 0.0
  %163 = vmatprep.subr.mxu0 0.0
  %164 = vmatpush1.msra.mxu0 0.0
  %165 = vmatprep.subr.mxu0 0.0
  %166 = vmatpush1.msra.mxu0 0.0
  %167 = vmatprep.subr.mxu0 0.0
  %168 = vmatpush1.msra.mxu0 0.0
  %169 = vmatprep.subr.mxu0 0.0
  %170 = vmatpush1.msra.mxu0 0.0
  %171 = vmatprep.subr.mxu0 0.0
  %172 = vmatpush1.msra.mxu0 0.0
  %173 = vmatprep.subr.mxu0 0.0
  %174 = vmatpush1.msra.mxu0 0.0
  %175 = vmatprep.subr.mxu0 0.0
  %176 = vmatpush1.msra.mxu0 0.0
  %177 = vmatprep.subr.mxu0 0.0
  %178 = vmatpush1.msra.mxu0 0.0
  %179 = vmatprep.subr.mxu0 0.0
  %180 = vmatpush1.msra.mxu0 0.0
  %181 = vmatprep.subr.mxu0 0.0
  %182 = vmatpush1.msra.mxu0 0.0
  %183 = vmatprep.subr.mxu0 0.0
  %184 = vmatpush1.msra.mxu0 0.0
  %185 = vmatprep.subr.mxu0 0.0
  %186 = vmatpush1.msra.mxu0 0.0
  %187 = vmatprep.subr.mxu0 0.0
  %188 = vmatpush1.msra.mxu0 0.0
  %189 = vmatprep.subr.mxu0 0.0
  %190 = vmatpush1.msra.mxu0 0.0
  %191 = vmatprep.subr.mxu0 0.0
  %192 = vmatpush1.msra.mxu0 0.0
  %193 = vmatprep.subr.mxu0 0.0
  %194 = vmatpush1.msra.mxu0 0.0
  %195 = vmatprep.subr.mxu0 0.0
  %196 = vmatpush1.msra.mxu0 0.0
  %197 = vmatprep.subr.mxu0 0.0
  %198 = vmatpush1.msra.mxu0 0.0
  %199 = vmatprep.subr.mxu0 0.0
  %200 = vmatpush1.msra.mxu0 0.0
  %201 = vmatprep.subr.mxu0 0.0
  %202 = vmatpush1.msra.mxu0 0.0
  %203 = vmatprep.subr.mxu0 0.0
  %204 = vmatpush1.msra.mxu0 0.0
  %205 = vmatprep.subr.mxu0 0.0
  %206 = vmatpush1.msra.mxu0 0.0
  %207 = vmatprep.subr.mxu0 0.0
  %208 = vmatpush1.msra.mxu0 0.0
  %209 = vmatprep.subr.mxu0 0.0
  %210 = vmatpush1.msra.mxu0 0.0
  %211 = vmatprep.subr.mxu0 0.0
  %212 = vmatpush1.msra.mxu0 0.0
  %213 = vmatprep.subr.mxu0 0.0
  %214 = vmatpush1.msra.mxu0 0.0
  %215 = vmatprep.subr.mxu0 0.0
  %216 = vmatpush1.msra.mxu0 0.0
  %217 = vmatprep.mubr.f32.mxu0 0.0
  %218 = vmatmul.mubr.f32.gmra.mrb[0].mxu0 %v148
  %v219 = vpop.f32.mrb[0].mxu0
  %v220 = vadd.f32 %v143, %v219
  %v221 = vpop.f32.mrb[0].mxu0
  %222 = vdwg.mxu0
  %v223 = vld [vmem:[%s5] sm:$0x1]
  %v225 = vlaneseq
  %v226 = vshrl.u32 %v225, 7
  %v227 = vsub.s32 0, %v226
  %v228 = vrot.slane %v223, %v227
  %v230 = vadd.f32 %v220, %v228
  %v231 = vmax.f32 %v230, 0.0
  %v232 = vld [vmem:[%s6] sm:$0xff]
  %v233 = vld [vmem:[%s6 + $0x8] sm:$0xff]
  %v234 = vld [vmem:[%s6 + $0x10] sm:$0xff]
  %v235 = vld [vmem:[%s6 + $0x18] sm:$0xff]
  %v236 = vld [vmem:[%s6 + $0x20] sm:$0xff]
  %v237 = vld [vmem:[%s6 + $0x28] sm:$0xff]
  %v238 = vld [vmem:[%s6 + $0x30] sm:$0xff]
  %v239 = vld [vmem:[%s6 + $0x38] sm:$0xff]
  %v240 = vld [vmem:[%s6 + $0x40] sm:$0xff]
  %v241 = vld [vmem:[%s6 + $0x48] sm:$0xff]
  %v242 = vld [vmem:[%s6 + $0x50] sm:$0xff]
  %v243 = vld [vmem:[%s6 + $0x58] sm:$0xff]
  %v244 = vld [vmem:[%s6 + $0x60] sm:$0xff]
  %v245 = vld [vmem:[%s6 + $0x68] sm:$0xff]
  %v246 = vld [vmem:[%s6 + $0x70] sm:$0xff]
  %v247 = vld [vmem:[%s6 + $0x78] sm:$0xff]
  %v248 = vld [vmem:[%s7] sm:$0x1]
  %v250 = vlaneseq
  %v251 = vshrl.u32 %v250, 7
  %v252 = vsub.s32 0, %v251
  %v253 = vrot.slane %v248, %v252
  %255 = vmatprep.subr.mxu0 0.0
  %256 = vmatpush1.msra.mxu0 %v232
  %257 = vmatprep.subr.mxu0 0.0
  %258 = vmatpush1.msra.mxu0 %v233
  %259 = vmatprep.subr.mxu0 0.0
  %260 = vmatpush1.msra.mxu0 %v234
  %261 = vmatprep.subr.mxu0 0.0
  %262 = vmatpush1.msra.mxu0 %v235
  %263 = vmatprep.subr.mxu0 0.0
  %264 = vmatpush1.msra.mxu0 %v236
  %265 = vmatprep.subr.mxu0 0.0
  %266 = vmatpush1.msra.mxu0 %v237
  %267 = vmatprep.subr.mxu0 0.0
  %268 = vmatpush1.msra.mxu0 %v238
  %269 = vmatprep.subr.mxu0 0.0
  %270 = vmatpush1.msra.mxu0 %v239
  %271 = vmatprep.subr.mxu0 0.0
  %272 = vmatpush1.msra.mxu0 %v240
  %273 = vmatprep.subr.mxu0 0.0
  %274 = vmatpush1.msra.mxu0 %v241
  %275 = vmatprep.subr.mxu0 0.0
  %276 = vmatpush1.msra.mxu0 %v242
  %277 = vmatprep.subr.mxu0 0.0
  %278 = vmatpush1.msra.mxu0 %v243
  %279 = vmatprep.subr.mxu0 0.0
  %280 = vmatpush1.msra.mxu0 %v244
  %281 = vmatprep.subr.mxu0 0.0
  %282 = vmatpush1.msra.mxu0 %v245
  %283 = vmatprep.subr.mxu0 0.0
  %284 = vmatpush1.msra.mxu0 %v246
  %285 = vmatprep.subr.mxu0 0.0
  %286 = vmatpush1.msra.mxu0 %v247
  %287 = vmatprep.subr.mxu0 0.0
  %288 = vmatpush1.msra.mxu0 0.0
  %289 = vmatprep.subr.mxu0 0.0
  %290 = vmatpush1.msra.mxu0 0.0
  %291 = vmatprep.subr.mxu0 0.0
  %292 = vmatpush1.msra.mxu0 0.0
  %293 = vmatprep.subr.mxu0 0.0
  %294 = vmatpush1.msra.mxu0 0.0
  %295 = vmatprep.subr.mxu0 0.0
  %296 = vmatpush1.msra.mxu0 0.0
  %297 = vmatprep.subr.mxu0 0.0
  %298 = vmatpush1.msra.mxu0 0.0
  %299 = vmatprep.subr.mxu0 0.0
  %300 = vmatpush1.msra.mxu0 0.0
  %301 = vmatprep.subr.mxu0 0.0
  %302 = vmatpush1.msra.mxu0 0.0
  %303 = vmatprep.subr.mxu0 0.0
  %304 = vmatpush1.msra.mxu0 0.0
  %305 = vmatprep.subr.mxu0 0.0
  %306 = vmatpush1.msra.mxu0 0.0
  %307 = vmatprep.subr.mxu0 0.0
  %308 = vmatpush1.msra.mxu0 0.0
  %309 = vmatprep.subr.mxu0 0.0
  %310 = vmatpush1.msra.mxu0 0.0
  %311 = vmatprep.subr.mxu0 0.0
  %312 = vmatpush1.msra.mxu0 0.0
  %313 = vmatprep.subr.mxu0 0.0
  %314 = vmatpush1.msra.mxu0 0.0
  %315 = vmatprep.subr.mxu0 0.0
  %316 = vmatpush1.msra.mxu0 0.0
  %317 = vmatprep.subr.mxu0 0.0
  %318 = vmatpush1.msra.mxu0 0.0
  %319 = vmatprep.mubr.f32.mxu0 0.0
  %320 = vmatmul.mubr.f32.gmra.mrb[0].mxu0 %v231
  %v321 = vpop.f32.mrb[0].mxu0
  %v322 = vadd.f32 %v253, %v321
  %v323 = vpop.f32.mrb[0].mxu0
  %324 = vdwg.mxu0
  %v325 = vmax.f32 %v322, 0.0
  %v326 = vld [vmem:[%s8] sm:$0xff]
  %v327 = vld [vmem:[%s8 + $0x8] sm:$0xff]
  %v328 = vld [vmem:[%s8 + $0x10] sm:$0xff]
  %v329 = vld [vmem:[%s8 + $0x18] sm:$0xff]
  %v330 = vld [vmem:[%s8 + $0x20] sm:$0xff]
  %v331 = vld [vmem:[%s8 + $0x28] sm:$0xff]
  %v332 = vld [vmem:[%s8 + $0x30] sm:$0xff]
  %v333 = vld [vmem:[%s8 + $0x38] sm:$0xff]
  %v334 = vld [vmem:[%s8 + $0x40] sm:$0xff]
  %v335 = vld [vmem:[%s8 + $0x48] sm:$0xff]
  %v336 = vld [vmem:[%s8 + $0x50] sm:$0xff]
  %v337 = vld [vmem:[%s8 + $0x58] sm:$0xff]
  %v338 = vld [vmem:[%s8 + $0x60] sm:$0xff]
  %v339 = vld [vmem:[%s8 + $0x68] sm:$0xff]
  %v340 = vld [vmem:[%s8 + $0x70] sm:$0xff]
  %v341 = vld [vmem:[%s8 + $0x78] sm:$0xff]
  %v342 = vld [vmem:[%s9] sm:$0x1]
  %v344 = vlaneseq
  %v345 = vshrl.u32 %v344, 7
  %v346 = vsub.s32 0, %v345
  %v347 = vrot.slane %v342, %v346
  %349 = vmatprep.subr.mxu0 0.0
  %350 = vmatpush1.msra.mxu0 %v326
  %351 = vmatprep.subr.mxu0 0.0
  %352 = vmatpush1.msra.mxu0 %v327
  %353 = vmatprep.subr.mxu0 0.0
  %354 = vmatpush1.msra.mxu0 %v328
  %355 = vmatprep.subr.mxu0 0.0
  %356 = vmatpush1.msra.mxu0 %v329
  %357 = vmatprep.subr.mxu0 0.0
  %358 = vmatpush1.msra.mxu0 %v330
  %359 = vmatprep.subr.mxu0 0.0
  %360 = vmatpush1.msra.mxu0 %v331
  %361 = vmatprep.subr.mxu0 0.0
  %362 = vmatpush1.msra.mxu0 %v332
  %363 = vmatprep.subr.mxu0 0.0
  %364 = vmatpush1.msra.mxu0 %v333
  %365 = vmatprep.subr.mxu0 0.0
  %366 = vmatpush1.msra.mxu0 %v334
  %367 = vmatprep.subr.mxu0 0.0
  %368 = vmatpush1.msra.mxu0 %v335
  %369 = vmatprep.subr.mxu0 0.0
  %370 = vmatpush1.msra.mxu0 %v336
  %371 = vmatprep.subr.mxu0 0.0
  %372 = vmatpush1.msra.mxu0 %v337
  %373 = vmatprep.subr.mxu0 0.0
  %374 = vmatpush1.msra.mxu0 %v338
  %375 = vmatprep.subr.mxu0 0.0
  %376 = vmatpush1.msra.mxu0 %v339
  %377 = vmatprep.subr.mxu0 0.0
  %378 = vmatpush1.msra.mxu0 %v340
  %379 = vmatprep.subr.mxu0 0.0
  %380 = vmatpush1.msra.mxu0 %v341
  %381 = vmatprep.subr.mxu0 0.0
  %382 = vmatpush1.msra.mxu0 0.0
  %383 = vmatprep.subr.mxu0 0.0
  %384 = vmatpush1.msra.mxu0 0.0
  %385 = vmatprep.subr.mxu0 0.0
  %386 = vmatpush1.msra.mxu0 0.0
  %387 = vmatprep.subr.mxu0 0.0
  %388 = vmatpush1.msra.mxu0 0.0
  %389 = vmatprep.subr.mxu0 0.0
  %390 = vmatpush1.msra.mxu0 0.0
  %391 = vmatprep.subr.mxu0 0.0
  %392 = vmatpush1.msra.mxu0 0.0
  %393 = vmatprep.subr.mxu0 0.0
  %394 = vmatpush1.msra.mxu0 0.0
  %395 = vmatprep.subr.mxu0 0.0
  %396 = vmatpush1.msra.mxu0 0.0
  %397 = vmatprep.subr.mxu0 0.0
  %398 = vmatpush1.msra.mxu0 0.0
  %399 = vmatprep.subr.mxu0 0.0
  %400 = vmatpush1.msra.mxu0 0.0
  %401 = vmatprep.subr.mxu0 0.0
  %402 = vmatpush1.msra.mxu0 0.0
  %403 = vmatprep.subr.mxu0 0.0
  %404 = vmatpush1.msra.mxu0 0.0
  %405 = vmatprep.subr.mxu0 0.0
  %406 = vmatpush1.msra.mxu0 0.0
  %407 = vmatprep.subr.mxu0 0.0
  %408 = vmatpush1.msra.mxu0 0.0
  %409 = vmatprep.subr.mxu0 0.0
  %410 = vmatpush1.msra.mxu0 0.0
  %411 = vmatprep.subr.mxu0 0.0
  %412 = vmatpush1.msra.mxu0 0.0
  %413 = vmatprep.mubr.f32.mxu0 0.0
  %414 = vmatmul.mubr.f32.gmra.mrb[0].mxu0 %v325
  %v415 = vpop.f32.mrb[0].mxu0
  %v416 = vadd.f32 %v347, %v415
  %v417 = vpop.f32.mrb[0].mxu0
  %418 = vdwg.mxu0
  %v419 = vld [vmem:[%s10] sm:$0xff]
  %v420 = vld [vmem:[%s10 + $0x8] sm:$0xff]
  %v421 = vld [vmem:[%s10 + $0x10] sm:$0xff]
  %v422 = vld [vmem:[%s10 + $0x18] sm:$0xff]
  %v423 = vld [vmem:[%s10 + $0x20] sm:$0xff]
  %v424 = vld [vmem:[%s10 + $0x28] sm:$0xff]
  %v425 = vld [vmem:[%s10 + $0x30] sm:$0xff]
  %v426 = vld [vmem:[%s10 + $0x38] sm:$0xff]
  %v427 = vld [vmem:[%s10 + $0x40] sm:$0xff]
  %v428 = vld [vmem:[%s10 + $0x48] sm:$0xff]
  %v429 = vld [vmem:[%s10 + $0x50] sm:$0xff]
  %v430 = vld [vmem:[%s10 + $0x58] sm:$0xff]
  %v431 = vld [vmem:[%s10 + $0x60] sm:$0xff]
  %v432 = vld [vmem:[%s10 + $0x68] sm:$0xff]
  %v433 = vld [vmem:[%s10 + $0x70] sm:$0xff]
  %v434 = vld [vmem:[%s10 + $0x78] sm:$0xff]
  %v435 = vld [vmem:[%s11] sm:$0x1]
  %v437 = vlaneseq
  %v438 = vshrl.u32 %v437, 7
  %v439 = vsub.s32 0, %v438
  %v440 = vrot.slane %v435, %v439
  %442 = vmatprep.subr.mxu0 0.0
  %443 = vmatpush1.msra.mxu0 %v419
  %444 = vmatprep.subr.mxu0 0.0
  %445 = vmatpush1.msra.mxu0 %v420
  %446 = vmatprep.subr.mxu0 0.0
  %447 = vmatpush1.msra.mxu0 %v421
  %448 = vmatprep.subr.mxu0 0.0
  %449 = vmatpush1.msra.mxu0 %v422
  %450 = vmatprep.subr.mxu0 0.0
  %451 = vmatpush1.msra.mxu0 %v423
  %452 = vmatprep.subr.mxu0 0.0
  %453 = vmatpush1.msra.mxu0 %v424
  %454 = vmatprep.subr.mxu0 0.0
  %455 = vmatpush1.msra.mxu0 %v425
  %456 = vmatprep.subr.mxu0 0.0
  %457 = vmatpush1.msra.mxu0 %v426
  %458 = vmatprep.subr.mxu0 0.0
  %459 = vmatpush1.msra.mxu0 %v427
  %460 = vmatprep.subr.mxu0 0.0
  %461 = vmatpush1.msra.mxu0 %v428
  %462 = vmatprep.subr.mxu0 0.0
  %463 = vmatpush1.msra.mxu0 %v429
  %464 = vmatprep.subr.mxu0 0.0
  %465 = vmatpush1.msra.mxu0 %v430
  %466 = vmatprep.subr.mxu0 0.0
  %467 = vmatpush1.msra.mxu0 %v431
  %468 = vmatprep.subr.mxu0 0.0
  %469 = vmatpush1.msra.mxu0 %v432
  %470 = vmatprep.subr.mxu0 0.0
  %471 = vmatpush1.msra.mxu0 %v433
  %472 = vmatprep.subr.mxu0 0.0
  %473 = vmatpush1.msra.mxu0 %v434
  %474 = vmatprep.subr.mxu0 0.0
  %475 = vmatpush1.msra.mxu0 0.0
  %476 = vmatprep.subr.mxu0 0.0
  %477 = vmatpush1.msra.mxu0 0.0
  %478 = vmatprep.subr.mxu0 0.0
  %479 = vmatpush1.msra.mxu0 0.0
  %480 = vmatprep.subr.mxu0 0.0
  %481 = vmatpush1.msra.mxu0 0.0
  %482 = vmatprep.subr.mxu0 0.0
  %483 = vmatpush1.msra.mxu0 0.0
  %484 = vmatprep.subr.mxu0 0.0
  %485 = vmatpush1.msra.mxu0 0.0
  %486 = vmatprep.subr.mxu0 0.0
  %487 = vmatpush1.msra.mxu0 0.0
  %488 = vmatprep.subr.mxu0 0.0
  %489 = vmatpush1.msra.mxu0 0.0
  %490 = vmatprep.subr.mxu0 0.0
  %491 = vmatpush1.msra.mxu0 0.0
  %492 = vmatprep.subr.mxu0 0.0
  %493 = vmatpush1.msra.mxu0 0.0
  %494 = vmatprep.subr.mxu0 0.0
  %495 = vmatpush1.msra.mxu0 0.0
  %496 = vmatprep.subr.mxu0 0.0
  %497 = vmatpush1.msra.mxu0 0.0
  %498 = vmatprep.subr.mxu0 0.0
  %499 = vmatpush1.msra.mxu0 0.0
  %500 = vmatprep.subr.mxu0 0.0
  %501 = vmatpush1.msra.mxu0 0.0
  %502 = vmatprep.subr.mxu0 0.0
  %503 = vmatpush1.msra.mxu0 0.0
  %504 = vmatprep.subr.mxu0 0.0
  %505 = vmatpush1.msra.mxu0 0.0
  %506 = vmatprep.mubr.f32.mxu0 0.0
  %507 = vmatmul.mubr.f32.gmra.mrb[0].mxu0 %v325
  %v508 = vpop.f32.mrb[0].mxu0
  %v509 = vadd.f32 %v440, %v508
  %v510 = vpop.f32.mrb[0].mxu0
  %511 = vdwg.mxu0
  %v512 = vmul.f32 %v509, 1.442695
  %v513 = vpow.pop %v512
  %v514 = vmul.f32 %v513, %v64
  %v515 = vadd.f32 %v416, %v514
  %v516 = vld [vmem:[%s12] sm:$0xff]
  %v517 = vld [vmem:[%s12 + $0x8] sm:$0xf]
  %v518 = vld [vmem:[%s13] sm:$0x3f]
  %vm519 = vcmask 48128
  %v521 = vsel %vm519, %v515, 0
  %vm523 = vcmask 1045504
  %v525 = vsel %vm523, %v518, 0
  %527 = vmatprep.subr.mxu0 0.0
  %528 = vmatpush1.msra.mxu0 %v525
  %529 = vmatprep.subr.mxu0 0.0
  %530 = vmatpush1.msra.mxu0 0.0
  %531 = vmatprep.subr.mxu0 0.0
  %532 = vmatpush1.msra.mxu0 0.0
  %533 = vmatprep.subr.mxu0 0.0
  %534 = vmatpush1.msra.mxu0 0.0
  %535 = vmatprep.subr.mxu0 0.0
  %536 = vmatpush1.msra.mxu0 0.0
  %537 = vmatprep.subr.mxu0 0.0
  %538 = vmatpush1.msra.mxu0 0.0
  %539 = vmatprep.subr.mxu0 0.0
  %540 = vmatpush1.msra.mxu0 0.0
  %541 = vmatprep.subr.mxu0 0.0
  %542 = vmatpush1.msra.mxu0 0.0
  %543 = vmatprep.subr.mxu0 0.0
  %544 = vmatpush1.msra.mxu0 0.0
  %545 = vmatprep.subr.mxu0 0.0
  %546 = vmatpush1.msra.mxu0 0.0
  %547 = vmatprep.subr.mxu0 0.0
  %548 = vmatpush1.msra.mxu0 0.0
  %549 = vmatprep.subr.mxu0 0.0
  %550 = vmatpush1.msra.mxu0 0.0
  %551 = vmatprep.subr.mxu0 0.0
  %552 = vmatpush1.msra.mxu0 0.0
  %553 = vmatprep.subr.mxu0 0.0
  %554 = vmatpush1.msra.mxu0 0.0
  %555 = vmatprep.subr.mxu0 0.0
  %556 = vmatpush1.msra.mxu0 0.0
  %557 = vmatprep.subr.mxu0 0.0
  %558 = vmatpush1.msra.mxu0 0.0
  %559 = vmatprep.subr.mxu0 0.0
  %560 = vmatpush1.msra.mxu0 0.0
  %561 = vmatprep.subr.mxu0 0.0
  %562 = vmatpush1.msra.mxu0 0.0
  %563 = vmatprep.subr.mxu0 0.0
  %564 = vmatpush1.msra.mxu0 0.0
  %565 = vmatprep.subr.mxu0 0.0
  %566 = vmatpush1.msra.mxu0 0.0
  %567 = vmatprep.subr.mxu0 0.0
  %568 = vmatpush1.msra.mxu0 0.0
  %569 = vmatprep.subr.mxu0 0.0
  %570 = vmatpush1.msra.mxu0 0.0
  %571 = vmatprep.subr.mxu0 0.0
  %572 = vmatpush1.msra.mxu0 0.0
  %573 = vmatprep.subr.mxu0 0.0
  %574 = vmatpush1.msra.mxu0 0.0
  %575 = vmatprep.subr.mxu0 0.0
  %576 = vmatpush1.msra.mxu0 0.0
  %577 = vmatprep.subr.mxu0 0.0
  %578 = vmatpush1.msra.mxu0 0.0
  %579 = vmatprep.subr.mxu0 0.0
  %580 = vmatpush1.msra.mxu0 0.0
  %581 = vmatprep.subr.mxu0 0.0
  %582 = vmatpush1.msra.mxu0 0.0
  %583 = vmatprep.subr.mxu0 0.0
  %584 = vmatpush1.msra.mxu0 0.0
  %585 = vmatprep.subr.mxu0 0.0
  %586 = vmatpush1.msra.mxu0 0.0
  %587 = vmatprep.subr.mxu0 0.0
  %588 = vmatpush1.msra.mxu0 0.0
  %589 = vmatprep.subr.mxu0 0.0
  %590 = vmatpush1.msra.mxu0 0.0
  %591 = vmatprep.mubr.f32.mxu0 0.0
  %592 = vmatmul.mubr.f32.gmra.mrb[0].mxu0 %v521
  %v593 = vpop.f32.mrb[0].mxu0
  %v594 = vadd.f32 0.0, %v593
  %v595 = vpop.f32.mrb[0].mxu0
  %596 = vdwg.mxu0
  %v598 = vsel %vm72, %v517, 0
  %600 = vmatprep.subr.mxu0 0.0
  %601 = vmatpush1.msra.mxu0 %v516
  %602 = vmatprep.subr.mxu0 0.0
  %603 = vmatpush1.msra.mxu0 %v598
  %604 = vmatprep.subr.mxu0 0.0
  %605 = vmatpush1.msra.mxu0 0.0
  %606 = vmatprep.subr.mxu0 0.0
  %607 = vmatpush1.msra.mxu0 0.0
  %608 = vmatprep.subr.mxu0 0.0
  %609 = vmatpush1.msra.mxu0 0.0
  %610 = vmatprep.subr.mxu0 0.0
  %611 = vmatpush1.msra.mxu0 0.0
  %612 = vmatprep.subr.mxu0 0.0
  %613 = vmatpush1.msra.mxu0 0.0
  %614 = vmatprep.subr.mxu0 0.0
  %615 = vmatpush1.msra.mxu0 0.0
  %616 = vmatprep.subr.mxu0 0.0
  %617 = vmatpush1.msra.mxu0 0.0
  %618 = vmatprep.subr.mxu0 0.0
  %619 = vmatpush1.msra.mxu0 0.0
  %620 = vmatprep.subr.mxu0 0.0
  %621 = vmatpush1.msra.mxu0 0.0
  %622 = vmatprep.subr.mxu0 0.0
  %623 = vmatpush1.msra.mxu0 0.0
  %624 = vmatprep.subr.mxu0 0.0
  %625 = vmatpush1.msra.mxu0 0.0
  %626 = vmatprep.subr.mxu0 0.0
  %627 = vmatpush1.msra.mxu0 0.0
  %628 = vmatprep.subr.mxu0 0.0
  %629 = vmatpush1.msra.mxu0 0.0
  %630 = vmatprep.subr.mxu0 0.0
  %631 = vmatpush1.msra.mxu0 0.0
  %632 = vmatprep.subr.mxu0 0.0
  %633 = vmatpush1.msra.mxu0 0.0
  %634 = vmatprep.subr.mxu0 0.0
  %635 = vmatpush1.msra.mxu0 0.0
  %636 = vmatprep.subr.mxu0 0.0
  %637 = vmatpush1.msra.mxu0 0.0
  %638 = vmatprep.subr.mxu0 0.0
  %639 = vmatpush1.msra.mxu0 0.0
  %640 = vmatprep.subr.mxu0 0.0
  %641 = vmatpush1.msra.mxu0 0.0
  %642 = vmatprep.subr.mxu0 0.0
  %643 = vmatpush1.msra.mxu0 0.0
  %644 = vmatprep.subr.mxu0 0.0
  %645 = vmatpush1.msra.mxu0 0.0
  %646 = vmatprep.subr.mxu0 0.0
  %647 = vmatpush1.msra.mxu0 0.0
  %648 = vmatprep.subr.mxu0 0.0
  %649 = vmatpush1.msra.mxu0 0.0
  %650 = vmatprep.subr.mxu0 0.0
  %651 = vmatpush1.msra.mxu0 0.0
  %652 = vmatprep.subr.mxu0 0.0
  %653 = vmatpush1.msra.mxu0 0.0
  %654 = vmatprep.subr.mxu0 0.0
  %655 = vmatpush1.msra.mxu0 0.0
  %656 = vmatprep.subr.mxu0 0.0
  %657 = vmatpush1.msra.mxu0 0.0
  %658 = vmatprep.subr.mxu0 0.0
  %659 = vmatpush1.msra.mxu0 0.0
  %660 = vmatprep.subr.mxu0 0.0
  %661 = vmatpush1.msra.mxu0 0.0
  %662 = vmatprep.subr.mxu0 0.0
  %663 = vmatpush1.msra.mxu0 0.0
  %664 = vmatprep.mubr.f32.mxu0 0.0
  %665 = vmatmul.mubr.f32.gmra.mrb[0].mxu0 %v148
  %v666 = vpop.f32.mrb[0].mxu0
  %v667 = vadd.f32 %v594, %v666
  %v668 = vpop.f32.mrb[0].mxu0
  %669 = vdwg.mxu0
  %v670 = vld [vmem:[%s14] sm:$0x1]
  %v672 = vlaneseq
  %v673 = vshrl.u32 %v672, 7
  %v674 = vsub.s32 0, %v673
  %v675 = vrot.slane %v670, %v674
  %v677 = vadd.f32 %v667, %v675
  %v678 = vmax.f32 %v677, 0.0
  %v679 = vld [vmem:[%s15] sm:$0xff]
  %v680 = vld [vmem:[%s15 + $0x8] sm:$0xff]
  %v681 = vld [vmem:[%s15 + $0x10] sm:$0xff]
  %v682 = vld [vmem:[%s15 + $0x18] sm:$0xff]
  %v683 = vld [vmem:[%s15 + $0x20] sm:$0xff]
  %v684 = vld [vmem:[%s15 + $0x28] sm:$0xff]
  %v685 = vld [vmem:[%s15 + $0x30] sm:$0xff]
  %v686 = vld [vmem:[%s15 + $0x38] sm:$0xff]
  %v687 = vld [vmem:[%s15 + $0x40] sm:$0xff]
  %v688 = vld [vmem:[%s15 + $0x48] sm:$0xff]
  %v689 = vld [vmem:[%s15 + $0x50] sm:$0xff]
  %v690 = vld [vmem:[%s15 + $0x58] sm:$0xff]
  %v691 = vld [vmem:[%s15 + $0x60] sm:$0xff]
  %v692 = vld [vmem:[%s15 + $0x68] sm:$0xff]
  %v693 = vld [vmem:[%s15 + $0x70] sm:$0xff]
  %v694 = vld [vmem:[%s15 + $0x78] sm:$0xff]
  %v695 = vld [vmem:[%s16] sm:$0x1]
  %v697 = vlaneseq
  %v698 = vshrl.u32 %v697, 7
  %v699 = vsub.s32 0, %v698
  %v700 = vrot.slane %v695, %v699
  %702 = vmatprep.subr.mxu0 0.0
  %703 = vmatpush1.msra.mxu0 %v679
  %704 = vmatprep.subr.mxu0 0.0
  %705 = vmatpush1.msra.mxu0 %v680
  %706 = vmatprep.subr.mxu0 0.0
  %707 = vmatpush1.msra.mxu0 %v681
  %708 = vmatprep.subr.mxu0 0.0
  %709 = vmatpush1.msra.mxu0 %v682
  %710 = vmatprep.subr.mxu0 0.0
  %711 = vmatpush1.msra.mxu0 %v683
  %712 = vmatprep.subr.mxu0 0.0
  %713 = vmatpush1.msra.mxu0 %v684
  %714 = vmatprep.subr.mxu0 0.0
  %715 = vmatpush1.msra.mxu0 %v685
  %716 = vmatprep.subr.mxu0 0.0
  %717 = vmatpush1.msra.mxu0 %v686
  %718 = vmatprep.subr.mxu0 0.0
  %719 = vmatpush1.msra.mxu0 %v687
  %720 = vmatprep.subr.mxu0 0.0
  %721 = vmatpush1.msra.mxu0 %v688
  %722 = vmatprep.subr.mxu0 0.0
  %723 = vmatpush1.msra.mxu0 %v689
  %724 = vmatprep.subr.mxu0 0.0
  %725 = vmatpush1.msra.mxu0 %v690
  %726 = vmatprep.subr.mxu0 0.0
  %727 = vmatpush1.msra.mxu0 %v691
  %728 = vmatprep.subr.mxu0 0.0
  %729 = vmatpush1.msra.mxu0 %v692
  %730 = vmatprep.subr.mxu0 0.0
  %731 = vmatpush1.msra.mxu0 %v693
  %732 = vmatprep.subr.mxu0 0.0
  %733 = vmatpush1.msra.mxu0 %v694
  %734 = vmatprep.subr.mxu0 0.0
  %735 = vmatpush1.msra.mxu0 0.0
  %736 = vmatprep.subr.mxu0 0.0
  %737 = vmatpush1.msra.mxu0 0.0
  %738 = vmatprep.subr.mxu0 0.0
  %739 = vmatpush1.msra.mxu0 0.0
  %740 = vmatprep.subr.mxu0 0.0
  %741 = vmatpush1.msra.mxu0 0.0
  %742 = vmatprep.subr.mxu0 0.0
  %743 = vmatpush1.msra.mxu0 0.0
  %744 = vmatprep.subr.mxu0 0.0
  %745 = vmatpush1.msra.mxu0 0.0
  %746 = vmatprep.subr.mxu0 0.0
  %747 = vmatpush1.msra.mxu0 0.0
  %748 = vmatprep.subr.mxu0 0.0
  %749 = vmatpush1.msra.mxu0 0.0
  %750 = vmatprep.subr.mxu0 0.0
  %751 = vmatpush1.msra.mxu0 0.0
  %752 = vmatprep.subr.mxu0 0.0
  %753 = vmatpush1.msra.mxu0 0.0
  %754 = vmatprep.subr.mxu0 0.0
  %755 = vmatpush1.msra.mxu0 0.0
  %756 = vmatprep.subr.mxu0 0.0
  %757 = vmatpush1.msra.mxu0 0.0
  %758 = vmatprep.subr.mxu0 0.0
  %759 = vmatpush1.msra.mxu0 0.0
  %760 = vmatprep.subr.mxu0 0.0
  %761 = vmatpush1.msra.mxu0 0.0
  %762 = vmatprep.subr.mxu0 0.0
  %763 = vmatpush1.msra.mxu0 0.0
  %764 = vmatprep.subr.mxu0 0.0
  %765 = vmatpush1.msra.mxu0 0.0
  %766 = vmatprep.mubr.f32.mxu0 0.0
  %767 = vmatmul.mubr.f32.gmra.mrb[0].mxu0 %v678
  %v768 = vpop.f32.mrb[0].mxu0
  %v769 = vadd.f32 %v700, %v768
  %v770 = vpop.f32.mrb[0].mxu0
  %771 = vdwg.mxu0
  %v772 = vmax.f32 %v769, 0.0
  %v773 = vld [vmem:[%s17] sm:$0xff]
  %v774 = vld [vmem:[%s17 + $0x8] sm:$0xff]
  %v775 = vld [vmem:[%s17 + $0x10] sm:$0xff]
  %v776 = vld [vmem:[%s17 + $0x18] sm:$0xff]
  %v777 = vld [vmem:[%s17 + $0x20] sm:$0xff]
  %v778 = vld [vmem:[%s17 + $0x28] sm:$0xff]
  %v779 = vld [vmem:[%s17 + $0x30] sm:$0xff]
  %v780 = vld [vmem:[%s17 + $0x38] sm:$0xff]
  %v781 = vld [vmem:[%s17 + $0x40] sm:$0xff]
  %v782 = vld [vmem:[%s17 + $0x48] sm:$0xff]
  %v783 = vld [vmem:[%s17 + $0x50] sm:$0xff]
  %v784 = vld [vmem:[%s17 + $0x58] sm:$0xff]
  %v785 = vld [vmem:[%s17 + $0x60] sm:$0xff]
  %v786 = vld [vmem:[%s17 + $0x68] sm:$0xff]
  %v787 = vld [vmem:[%s17 + $0x70] sm:$0xff]
  %v788 = vld [vmem:[%s17 + $0x78] sm:$0xff]
  %v789 = vld [vmem:[%s18] sm:$0x1]
  %v791 = vlaneseq
  %v792 = vshrl.u32 %v791, 7
  %v793 = vsub.s32 0, %v792
  %v794 = vrot.slane %v789, %v793
  %796 = vmatprep.subr.mxu0 0.0
  %797 = vmatpush1.msra.mxu0 %v773
  %798 = vmatprep.subr.mxu0 0.0
  %799 = vmatpush1.msra.mxu0 %v774
  %800 = vmatprep.subr.mxu0 0.0
  %801 = vmatpush1.msra.mxu0 %v775
  %802 = vmatprep.subr.mxu0 0.0
  %803 = vmatpush1.msra.mxu0 %v776
  %804 = vmatprep.subr.mxu0 0.0
  %805 = vmatpush1.msra.mxu0 %v777
  %806 = vmatprep.subr.mxu0 0.0
  %807 = vmatpush1.msra.mxu0 %v778
  %808 = vmatprep.subr.mxu0 0.0
  %809 = vmatpush1.msra.mxu0 %v779
  %810 = vmatprep.subr.mxu0 0.0
  %811 = vmatpush1.msra.mxu0 %v780
  %812 = vmatprep.subr.mxu0 0.0
  %813 = vmatpush1.msra.mxu0 %v781
  %814 = vmatprep.subr.mxu0 0.0
  %815 = vmatpush1.msra.mxu0 %v782
  %816 = vmatprep.subr.mxu0 0.0
  %817 = vmatpush1.msra.mxu0 %v783
  %818 = vmatprep.subr.mxu0 0.0
  %819 = vmatpush1.msra.mxu0 %v784
  %820 = vmatprep.subr.mxu0 0.0
  %821 = vmatpush1.msra.mxu0 %v785
  %822 = vmatprep.subr.mxu0 0.0
  %823 = vmatpush1.msra.mxu0 %v786
  %824 = vmatprep.subr.mxu0 0.0
  %825 = vmatpush1.msra.mxu0 %v787
  %826 = vmatprep.subr.mxu0 0.0
  %827 = vmatpush1.msra.mxu0 %v788
  %828 = vmatprep.subr.mxu0 0.0
  %829 = vmatpush1.msra.mxu0 0.0
  %830 = vmatprep.subr.mxu0 0.0
  %831 = vmatpush1.msra.mxu0 0.0
  %832 = vmatprep.subr.mxu0 0.0
  %833 = vmatpush1.msra.mxu0 0.0
  %834 = vmatprep.subr.mxu0 0.0
  %835 = vmatpush1.msra.mxu0 0.0
  %836 = vmatprep.subr.mxu0 0.0
  %837 = vmatpush1.msra.mxu0 0.0
  %838 = vmatprep.subr.mxu0 0.0
  %839 = vmatpush1.msra.mxu0 0.0
  %840 = vmatprep.subr.mxu0 0.0
  %841 = vmatpush1.msra.mxu0 0.0
  %842 = vmatprep.subr.mxu0 0.0
  %843 = vmatpush1.msra.mxu0 0.0
  %844 = vmatprep.subr.mxu0 0.0
  %845 = vmatpush1.msra.mxu0 0.0
  %846 = vmatprep.subr.mxu0 0.0
  %847 = vmatpush1.msra.mxu0 0.0
  %848 = vmatprep.subr.mxu0 0.0
  %849 = vmatpush1.msra.mxu0 0.0
  %850 = vmatprep.subr.mxu0 0.0
  %851 = vmatpush1.msra.mxu0 0.0
  %852 = vmatprep.subr.mxu0 0.0
  %853 = vmatpush1.msra.mxu0 0.0
  %854 = vmatprep.subr.mxu0 0.0
  %855 = vmatpush1.msra.mxu0 0.0
  %856 = vmatprep.subr.mxu0 0.0
  %857 = vmatpush1.msra.mxu0 0.0
  %858 = vmatprep.subr.mxu0 0.0
  %859 = vmatpush1.msra.mxu0 0.0
  %860 = vmatprep.mubr.f32.mxu0 0.0
  %861 = vmatmul.mubr.f32.gmra.mrb[0].mxu0 %v772
  %v862 = vpop.f32.mrb[0].mxu0
  %v863 = vadd.f32 %v794, %v862
  %v864 = vpop.f32.mrb[0].mxu0
  %865 = vdwg.mxu0
  %v866 = vtanh.pop %v863
  %867 = vst [vmem:[%s19] sm:$0xff] 0.0
  %868 = vst.msk [vmem:[%s19] sm:$0xff] %vm68, %v866
  %870 = vrot.lane.b32.xlu0 %v416, 4
  %v871 = vpop.permute.xlu0 %870
  %vm873 = vcmask 80928
  %874 = vst.msk [vmem:[%s19] sm:$0xff] %vm873, %v871
  %876 = vrot.lane.b32.xlu0 %v513, 10
  %v877 = vpop.permute.xlu0 %876
  %vm879 = vcmask 130128
  %880 = vst.msk [vmem:[%s19] sm:$0xff] %vm879, %v877
  // Predicated region
  $region78: #{vae_forward.1} parent=0 // pred_check
    _
  $region79: #{vae_forward.1} parent=0 // pred_check_branch
    %882 = sbr.rel (0) target = $region81
  $region80: #{vae_forward.1} parent=0 // pred_region
    _
  $region81: #{vae_forward.1} parent=0 // pred_fallthru
    _
  // Predicated region
  $region82: #{vae_forward.1} parent=0 // pred_check
    _
  $region83: #{vae_forward.1} parent=0 // pred_check_branch
    %884 = sbr.rel (0) target = $region85
  $region84: #{vae_forward.1} parent=0 // pred_region
    _
  $region85: #{vae_forward.1} parent=0 // pred_fallthru
    _

</llo_original>
